<compile_context>
chip_gen: v7x
topology: tpu7x:2x2x1
jax: 0.10.0
libtpu: 0.0.40
codegen_flags: <defaults>
</compile_context>

<pallas_src>
import functools
import math

import jax
import jax.numpy as jnp
from jax.experimental import pallas as pl
from jax.experimental.pallas import tpu as pltpu


# ----------------------------------------------------------------------------
# Pallas kernel
# ----------------------------------------------------------------------------
def _cca_kernel(e_ref, attd_ref, wblk_ref, out_ref, *, inv_hw):
    """One row-block of the fused CCA forward.

    e_ref    : (R, HW)  rows are (batch, channel) pairs, lanes are spatial
    attd_ref : (R, 1)   precomputed 0.5 * (pool_d @ W_d.T + b_d + b_e) per row
    wblk_ref : (R, R)   block-diagonal 0.5 * W_e (one copy per batch in block)
    out_ref  : (R, HW)
    """
    e = e_ref[...].astype(jnp.float32)

    # Global average pool over the spatial (lane) axis -> (R, 1).  XLU reduce.
    pool = jnp.sum(e, axis=1, keepdims=True) * inv_hw

    # Channel mixing: tiny block-diagonal matvec on VMEM-resident data.  This
    # avoids any cross-lane/sublane relayout of the pooled vector (no concat /
    # reshape / transpose); the single small vmatmul is off the streaming path.
    att = jnp.dot(wblk_ref[...], pool,
                  preferred_element_type=jnp.float32) + attd_ref[...]   # (R, 1)

    scale = jax.nn.sigmoid(att)                                          # EUP path

    # Channel gate + ReLU, lane-dense store.
    out_ref[...] = jnp.maximum(e * scale, 0.0).astype(out_ref.dtype)


# ----------------------------------------------------------------------------
# Block-size selection
# ----------------------------------------------------------------------------
def _rows_per_block(total_rows, C, hw, itemsize, target_block_bytes=2 << 20):
    """Pick a sublane-dense row-block size.

    The block's second-to-last dim must be a multiple of the native sublane
    tile (8 for 32-bit, 16 for 16-bit, ...) and a multiple of C so every block
    holds whole batch elements (required by the block-diagonal weight).
    Blocks are capped at ~2 MiB so double-buffered in+out stays well inside
    v7x's 64 MiB / v5e's 16 MiB scoped VMEM, and we keep >= 2 grid steps so
    the pipeline actually overlaps DMA with compute.
    """
    sub = 8 * max(1, 4 // itemsize)
    base = (sub * C) // math.gcd(sub, C)          # lcm(sub, C)
    if total_rows % base != 0:
        return total_rows                         # tiny-shape fallback: one full block
    rows = base
    while (total_rows % (2 * rows) == 0
           and 2 * rows * hw * itemsize <= target_block_bytes
           and total_rows // (2 * rows) >= 2):
        rows *= 2
    return rows


# ----------------------------------------------------------------------------
# Wrapper
# ----------------------------------------------------------------------------
@functools.partial(jax.jit, static_argnames="size")
def cca(d, e, w_e, b_e, w_d, b_d, size):
    """CCA(d, e) with PyTorch NCHW inputs; output NCHW, dtype follows e."""
    B, C, H, W = e.shape
    assert d.shape == (B, C, H, W)
    # TODO(synk): general windowed avg_pool2d (H > size) not implemented; the
    # standard CCA configuration has H == W == size (global average pool).
    assert H == size and W == size
    HW = H * W
    total_rows = B * C
    itemsize = jnp.dtype(e.dtype).itemsize

    R = _rows_per_block(total_rows, C, HW, itemsize)
    bb = R // C                                   # batches per block
    num_blocks = total_rows // R

    f32 = jnp.float32

    # ---- d branch: d is only needed for its (B, C) mean, so it never streams
    # through the Pallas kernel.  Fold its Linear and both biases into a single
    # tiny per-row additive term.
    pool_d = jnp.mean(d.astype(f32), axis=(2, 3))                         # (B, C)
    attd = 0.5 * (pool_d @ w_d.astype(f32).T
                  + b_d.astype(f32) + b_e.astype(f32))                    # (B, C)
    attd_rows = attd.reshape(total_rows, 1)

    # ---- e branch weights: block-diagonal 0.5*W_e, one copy per batch in a
    # block (rows/cols are (batch, channel) pairs).  Weight-only; hoistable.
    w_blk = jnp.kron(jnp.eye(bb, dtype=f32), 0.5 * w_e.astype(f32))       # (R, R)

    e_rows = e.reshape(total_rows, HW)                                    # contiguous view

    kernel = functools.partial(_cca_kernel, inv_hw=1.0 / float(HW))

    out = pl.pallas_call(
        kernel,
        out_shape=jax.ShapeDtypeStruct((total_rows, HW), e.dtype),
        grid=(num_blocks,),
        in_specs=[
            pl.BlockSpec((R, HW), lambda i: (i, 0)),
            pl.BlockSpec((R, 1), lambda i: (i, 0)),
            pl.BlockSpec((R, R), lambda i: (0, 0)),   # constant index -> stays VMEM-resident
        ],
        out_specs=pl.BlockSpec((R, HW), lambda i: (i, 0)),
        compiler_params=pltpu.CompilerParams(
            dimension_semantics=("parallel",),        # megacore sharding on v7x
            vmem_limit_bytes=32 * 1024 * 1024,
        ),
    )(e_rows, attd_rows, w_blk)

    return out.reshape(B, C, H, W)


# ----------------------------------------------------------------------------
# Self-test
# ----------------------------------------------------------------------------
def _reference(d, e, w_e, b_e, w_d, b_d):
    pool_e = jnp.mean(e, axis=(2, 3))
    pool_d = jnp.mean(d, axis=(2, 3))
    att = 0.5 * ((pool_e @ w_e.T + b_e) + (pool_d @ w_d.T + b_d))
    return jnp.maximum(e * jax.nn.sigmoid(att)[:, :, None, None], 0.0)


if __name__ == "__main__":
    key = jax.random.PRNGKey(0)
    C, size = 4, 16

    kd, ke, kw = jax.random.split(key, 3)
    ks = jax.random.split(kw, 4)
    w_e = 0.1 * jax.random.normal(ks[0], (C, C), jnp.float32)
    b_e = 0.1 * jax.random.normal(ks[1], (C,), jnp.float32)
    w_d = 0.1 * jax.random.normal(ks[2], (C, C), jnp.float32)
    b_d = 0.1 * jax.random.normal(ks[3], (C,), jnp.float32)

    ok = True
    for B in (4, 2):                                 # B=4: grid=(2,); B=2: single-block fallback
        d = jax.random.normal(jax.random.fold_in(kd, B), (B, C, size, size), jnp.float32)
        e = jax.random.normal(jax.random.fold_in(ke, B), (B, C, size, size), jnp.float32)

        out = cca(d, e, w_e, b_e, w_d, b_d, size=size)
        out = jax.block_until_ready(out)

        ref = _reference(d, e, w_e, b_e, w_d, b_d)
        ok &= out.shape == (B, C, size, size)
        ok &= bool(jnp.all(jnp.isfinite(out)))
        ok &= bool(jnp.allclose(out, ref, atol=1e-5, rtol=1e-5))

    assert ok
    print("KERNEL_OK")
</pallas_src>

<mosaic_0001>
module attributes {stable_mosaic.version = 11 : i64} {
  func.func @_cca_kernel(%arg0: i32, %arg1: memref<8x256xf32, #tpu.memory_space<vmem>>, %arg2: memref<8x1xf32, #tpu.memory_space<vmem>>, %arg3: memref<8x8xf32, #tpu.memory_space<vmem>>, %arg4: memref<8x256xf32, #tpu.memory_space<vmem>>) attributes {dimension_semantics = [#tpu.dimension_semantics<parallel>], iteration_bounds = array<i64: 2>, scalar_prefetch = 0 : i64, scratch_operands = 0 : i64, tpu.core_type = #tpu.core_type<tc>, window_params = [{transform_indices = @transform_0, window_bounds = array<i64: 8, 256>}, {transform_indices = @transform_1, window_bounds = array<i64: 8, 1>}, {pipeline_mode = #tpu.pipeline_mode<synchronous>, transform_indices = @transform_2, window_bounds = array<i64: 8, 8>}, {transform_indices = @transform_3, window_bounds = array<i64: 8, 256>}]} {
    %c0 = arith.constant 0 : index
    %c0_0 = arith.constant 0 : index
    %0 = vector.load %arg1[%c0, %c0_0] : memref<8x256xf32, #tpu.memory_space<vmem>>, vector<8x256xf32>
    %cst = arith.constant dense<0.000000e+00> : vector<8xf32>
    %1 = vector.multi_reduction <add>, %0, %cst [1] : vector<8x256xf32> to vector<8xf32>
    %2 = vector.shape_cast %1 : vector<8xf32> to vector<8x1xf32>
    %cst_1 = arith.constant 3.906250e-03 : f32
    %3 = vector.broadcast %cst_1 : f32 to vector<8x1xf32>
    %4 = arith.mulf %2, %3 : vector<8x1xf32>
    %c0_2 = arith.constant 0 : index
    %c0_3 = arith.constant 0 : index
    %5 = vector.load %arg3[%c0_2, %c0_3] : memref<8x8xf32, #tpu.memory_space<vmem>>, vector<8x8xf32>
    %cst_4 = arith.constant dense<0.000000e+00> : vector<8x1xf32>
    %6 = tpu.matmul %5, %4, %cst_4 {dimension_numbers = #tpu.dot_dimension_numbers<[1], [0], [0], [1], [0, 0, 1, 1], [], []>} : vector<8x8xf32>, vector<8x1xf32>, vector<8x1xf32> -> vector<8x1xf32>
    %c0_5 = arith.constant 0 : index
    %c0_6 = arith.constant 0 : index
    %7 = vector.load %arg2[%c0_5, %c0_6] : memref<8x1xf32, #tpu.memory_space<vmem>>, vector<8x1xf32>
    %8 = arith.addf %6, %7 : vector<8x1xf32>
    %9 = arith.negf %8 : vector<8x1xf32>
    %10 = math.exp %9 : vector<8x1xf32>
    %cst_7 = arith.constant 1.000000e+00 : f32
    %11 = vector.broadcast %cst_7 : f32 to vector<8x1xf32>
    %12 = arith.addf %11, %10 : vector<8x1xf32>
    %13 = arith.divf %11, %12 : vector<8x1xf32>
    %14 = vector.broadcast %13 : vector<8x1xf32> to vector<8x256xf32>
    %15 = arith.mulf %0, %14 : vector<8x256xf32>
    %cst_8 = arith.constant 0.000000e+00 : f32
    %16 = vector.broadcast %cst_8 : f32 to vector<8x256xf32>
    %17 = arith.maximumf %15, %16 : vector<8x256xf32>
    %c0_9 = arith.constant 0 : index
    %c0_10 = arith.constant 0 : index
    %18 = vector.load %arg4[%c0_9, %c0_10] : memref<8x256xf32, #tpu.memory_space<vmem>>, vector<8x256xf32>
    tpu.vector_store %arg4[%c0_9, %c0_10], %17 {strides = array<i32>} : memref<8x256xf32, #tpu.memory_space<vmem>>, vector<8x256xf32>,
    return
  }
  func.func @transform_0(%arg0: i32) -> (i32, i32) {
    %c0_i32 = arith.constant 0 : i32
    %c0_i32_0 = arith.constant 0 : i32
    return %arg0, %c0_i32 : i32, i32
  }
  func.func @transform_1(%arg0: i32) -> (i32, i32) {
    %c0_i32 = arith.constant 0 : i32
    %c0_i32_0 = arith.constant 0 : i32
    return %arg0, %c0_i32 : i32, i32
  }
  func.func @transform_2(%arg0: i32) -> (i32, i32) {
    %c0_i32 = arith.constant 0 : i32
    %c0_i32_0 = arith.constant 0 : i32
    %c0_i32_1 = arith.constant 0 : i32
    return %c0_i32, %c0_i32_0 : i32, i32
  }
  func.func @transform_3(%arg0: i32) -> (i32, i32) {
    %c0_i32 = arith.constant 0 : i32
    %c0_i32_0 = arith.constant 0 : i32
    return %arg0, %c0_i32 : i32, i32
  }
}

</mosaic_0001>

<llo_original>
// kernel: cca.1
$region0: #{cca.1}
  #allocation0 [shape = 'u32[]', space=smem, size = 0x4, offset = 0x4, fixed_abs, tag = 'smem constant byte address 0x4 - core index']
  #allocation1 [shape = 'u32[144,128]{1,0:T(1,128)}', space=vmem, size = 0x12000, scoped, tag = 'internal scratch']
  %s0 = inlined_call_operand.vmem [shape: f32[16,256], index: 0, kind: input, shape index: {}]
  %s1 = inlined_call_operand.vmem [shape: f32[16,1], index: 1, kind: input, shape index: {}]
  %s2 = inlined_call_operand.vmem [shape: f32[8,8], index: 2, kind: input, shape index: {}]
  %s3 = inlined_call_operand.vmem [shape: f32[16,256], index: 3, kind: output, shape index: {}]
  %s4 = sld [smem:[#allocation0]]
  $region45: #{cca.1} parent=0
    _
  %s6 = ssub.s32 1, %s4
  %s7 = scalar_select 0, %s6, %s4
  loop: start=0, step=1, limit=4
  $region2: #{cca.1} parent=0 // loop_pre_header
    _
  $region3: #{cca.1} parent=0 // loop_header
    %s9 = sphi 0, %s13
    %p10 = scmp.ge.s32.totalorder %s9, 4
    %s19 = sphi 0, %s21
    %s22 = sphi 0, %s19
    %s23 = sphi 0, %s22
    %s39 = sphi 0, %s23
    %s45 = sphi 0, %s47
    %s48 = sphi 0, %s45
    %s49 = sphi 0, %s48
    %s65 = sphi 0, %s49
    %s69 = sphi 0, %s69
    %s71 = sphi 0, %s69
    %s72 = sphi 0, %s71
    %s86 = sphi 0, %s72
    %s92 = sphi 0, %s94
    %s95 = sphi 0, %s92
    %s96 = sphi 0, %s95
    %s112 = sphi 0, %s96
  $region4: #{cca.1} parent=0 // loop_header_branch
    %12 = sbr.rel (%p10) target = $region8
  $region5: #{cca.1} parent=0 // loop_body
    %s14 = ssub.s32 %s9, 1
    %s15 = ssub.s32 %s9, 2
    %s16 = sadd.s32 %s9, 1
    %s17 = ssub.s32 %s9, %s16
    %p18 = scmp.eq.s32.totalorder %s17, 0
    %s20 = sadd.s32 %s19, 1
    %s21 = scalar_select %p18, %s19, %s20
    %p24 = pneg %p18
    %p25 = scmp.eq.s32.totalorder %s9, 1
    %p26 = por %p24, %p25
    %p27 = scmp.ne.s32.totalorder %s19, %s22
    %p28 = scmp.eq.s32.totalorder %s9, 0
    %p29 = por %p27, %p28
    %p30 = scmp.ne.s32.totalorder %s19, %s22
    %p31 = scmp.eq.s32.totalorder %s14, 1
    %p32 = por %p30, %p31
    %p33 = scmp.ne.s32.totalorder %s22, %s23
    %p34 = scmp.eq.s32.totalorder %s14, 0
    %p35 = por %p33, %p34
    %p36 = scmp.ne.s32.totalorder %s22, %s23
    %p37 = scmp.eq.s32.totalorder %s15, 1
    %p38 = por %p36, %p37
    %p40 = scmp.ne.s32.totalorder %s23, %s39
    %p41 = scmp.eq.s32.totalorder %s15, 0
    %p42 = por %p40, %p41
    %s43 = ssub.s32 %s9, %s16
    %p44 = scmp.eq.s32.totalorder %s43, 0
    %s46 = sadd.s32 %s45, 1
    %s47 = scalar_select %p44, %s45, %s46
    %p50 = pneg %p44
    %p51 = scmp.eq.s32.totalorder %s9, 1
    %p52 = por %p50, %p51
    %p53 = scmp.ne.s32.totalorder %s45, %s48
    %p54 = scmp.eq.s32.totalorder %s9, 0
    %p55 = por %p53, %p54
    %p56 = scmp.ne.s32.totalorder %s45, %s48
    %p57 = scmp.eq.s32.totalorder %s14, 1
    %p58 = por %p56, %p57
    %p59 = scmp.ne.s32.totalorder %s48, %s49
    %p60 = scmp.eq.s32.totalorder %s14, 0
    %p61 = por %p59, %p60
    %p62 = scmp.ne.s32.totalorder %s48, %s49
    %p63 = scmp.eq.s32.totalorder %s15, 1
    %p64 = por %p62, %p63
    %p66 = scmp.ne.s32.totalorder %s49, %s65
    %p67 = scmp.eq.s32.totalorder %s15, 0
    %p68 = por %p66, %p67
    %s70 = sadd.s32 %s69, 1
    %p73 = scmp.eq.s32.totalorder %s9, 1
    %p74 = scmp.ne.s32.totalorder %s69, %s71
    %p75 = scmp.eq.s32.totalorder %s9, 0
    %p76 = por %p74, %p75
    %p77 = scmp.ne.s32.totalorder %s69, %s71
    %p78 = scmp.eq.s32.totalorder %s14, 1
    %p79 = por %p77, %p78
    %p80 = scmp.ne.s32.totalorder %s71, %s72
    %p81 = scmp.eq.s32.totalorder %s14, 0
    %p82 = por %p80, %p81
    %p83 = scmp.ne.s32.totalorder %s71, %s72
    %p84 = scmp.eq.s32.totalorder %s15, 1
    %p85 = por %p83, %p84
    %p87 = scmp.ne.s32.totalorder %s72, %s86
    %p88 = scmp.eq.s32.totalorder %s15, 0
    %p89 = por %p87, %p88
    %s90 = ssub.s32 %s9, %s16
    %p91 = scmp.eq.s32.totalorder %s90, 0
    %s93 = sadd.s32 %s92, 1
    %s94 = scalar_select %p91, %s92, %s93
    %p97 = pneg %p91
    %p98 = scmp.eq.s32.totalorder %s9, 1
    %p99 = por %p97, %p98
    %p100 = scmp.ne.s32.totalorder %s92, %s95
    %p101 = scmp.eq.s32.totalorder %s9, 0
    %p102 = por %p100, %p101
    %p103 = scmp.ne.s32.totalorder %s92, %s95
    %p104 = scmp.eq.s32.totalorder %s14, 1
    %p105 = por %p103, %p104
    %p106 = scmp.ne.s32.totalorder %s95, %s96
    %p107 = scmp.eq.s32.totalorder %s14, 0
    %p108 = por %p106, %p107
    %p109 = scmp.ne.s32.totalorder %s95, %s96
    %p110 = scmp.eq.s32.totalorder %s15, 1
    %p111 = por %p109, %p110
    %p113 = scmp.ne.s32.totalorder %s96, %s112
    %p114 = scmp.eq.s32.totalorder %s15, 0
    %p115 = por %p113, %p114
    %p116 = scmp.le.s32.totalorder 1, %s9
    %p117 = scmp.lt.s32.totalorder %s9, 3
    %p118 = pnand %p116, %p117
    %p119 = pneg %p118
    // Predicated region
    $region9: #{cca.1} parent=5 // pred_check
      _
    $region10: #{cca.1} parent=5 // pred_check_branch
      %121 = sbr.rel (%p118) target = $region12
    $region11: #{cca.1} parent=5 // pred_region
      %s122 = ssub.s32 %s9, 1
      // Predicated region
      $region13: #{cca.1} parent=11 // pred_check
        %p123 = pneg %p82
      $region14: #{cca.1} parent=11 // pred_check_branch
        %125 = sbr.rel (%p123) target = $region16
      $region15: #{cca.1} parent=11 // pred_region
        _
      $region16: #{cca.1} parent=11 // pred_fallthru
        _
    $region12: #{cca.1} parent=5 // pred_fallthru
      _
    %p126 = scmp.lt.s32.totalorder %s9, 2
    // Predicated region
    $region17: #{cca.1} parent=5 // pred_check
      %p127 = pneg %p126
    $region18: #{cca.1} parent=5 // pred_check_branch
      %129 = sbr.rel (%p127) target = $region20
    $region19: #{cca.1} parent=5 // pred_region
      // Predicated region
      $region21: #{cca.1} parent=19 // pred_check
        %p130 = pneg %p29
      $region22: #{cca.1} parent=19 // pred_check_branch
        %132 = sbr.rel (%p130) target = $region24
      $region23: #{cca.1} parent=19 // pred_region
        %p133 = scmp.lt.s32.totalorder %s9, 1
        %s134 = scalar_select %p133, %s9, 1
        %s135 = smul.addr %s134, 2
        %s136 = smul.addr %s135, 8
        %s137 = scalar_lea.vmem %s0, %s136
      $region24: #{cca.1} parent=19 // pred_fallthru
        _
      // Predicated region
      $region25: #{cca.1} parent=19 // pred_check
        %p138 = pneg %p55
      $region26: #{cca.1} parent=19 // pred_check_branch
        %140 = sbr.rel (%p138) target = $region28
      $region27: #{cca.1} parent=19 // pred_region
        %p141 = scmp.lt.s32.totalorder %s9, 1
        %s142 = scalar_select %p141, %s9, 1
        %s143 = smul.addr %s142, 8
        %s144 = scalar_lea.vmem %s1, %s143
      $region28: #{cca.1} parent=19 // pred_fallthru
        _
    $region20: #{cca.1} parent=5 // pred_fallthru
      _
    %p145 = scmp.le.s32.totalorder 1, %s9
    %p146 = scmp.lt.s32.totalorder %s9, 3
    %p147 = pnand %p145, %p146
    %p148 = pneg %p147
    // Predicated region
    $region29: #{cca.1} parent=5 // pred_check
      _
    $region30: #{cca.1} parent=5 // pred_check_branch
      %150 = sbr.rel (%p147) target = $region32
    $region31: #{cca.1} parent=5 // pred_region
      %s151 = ssub.s32 %s9, 1
      %p152 = scmp.lt.s32.totalorder %s14, 1
      %s153 = scalar_select %p152, %s14, 1
      %s154 = smul.addr %s153, 2
      %s155 = smul.addr %s154, 8
      %s156 = scalar_lea.vmem %s0, %s155
      %p157 = pneg %p35
      %p158 = pneg %p32
      %p159 = scmp.lt.s32.totalorder %s14, 1
      %s160 = scalar_select %p159, %s14, 1
      %s161 = smul.addr %s160, 8
      %s162 = scalar_lea.vmem %s1, %s161
      %p163 = pneg %p61
      %p164 = pneg %p58
      %p165 = pneg %p82
      %p166 = pneg %p79
      %p167 = pneg %p108
      %p168 = pneg %p105
      %p169 = scmp.lt.s32.totalorder %s14, 1
      %s170 = scalar_select %p169, %s14, 1
      %s171 = smul.addr %s170, 2
      %s172 = smul.addr %s171, 8
      %s173 = scalar_lea.vmem %s3, %s172
      %p174 = scmp.lt.s32.totalorder %s14, 1
      %s175 = scalar_select %p174, %s14, 1
      %s176 = smul.addr %s175, 2
      %s177 = smul.addr %s176, 8
      %s178 = scalar_lea.vmem %s0, %s177
      %p179 = scmp.lt.s32.totalorder %s14, 1
      %s180 = scalar_select %p179, %s14, 1
      %s181 = smul.addr %s180, 8
      %s182 = scalar_lea.vmem %s1, %s181
      %p183 = scmp.lt.s32.totalorder %s14, 1
      %s184 = scalar_select %p183, %s14, 1
      %s185 = smul.addr %s184, 2
      %s186 = smul.addr %s185, 8
      %s187 = scalar_lea.vmem %s3, %s186
      %v188 = vld [vmem:[%s178] sm:$0xff]
      %v189 = vld [vmem:[%s178 + $0x8] sm:$0xff]
      %v190 = vadd.f32 %v188, %v189
      %191 = vadd.xlane.f32.xlu0 %v190
      %v192 = vpop.xlane.xlu0 %191
      %v193 = vmul.f32 %v192, 0.00390625
      %v194 = vld [vmem:[%s2] sm:$0xff]
      %v195 = vld [vmem:[%s182] sm:$0xff]
      %vm196 = vcmask 64512
      %v198 = vsel %vm196, %v194, 0
      %200 = vmatprep.subr.mxu0 0.0
      %201 = vmatpush1.msra.mxu0 %v193
      %202 = vmatprep.subr.mxu0 0.0
      %203 = vmatpush1.msra.mxu0 0.0
      %204 = vmatprep.subr.mxu0 0.0
      %205 = vmatpush1.msra.mxu0 0.0
      %206 = vmatprep.subr.mxu0 0.0
      %207 = vmatpush1.msra.mxu0 0.0
      %208 = vmatprep.subr.mxu0 0.0
      %209 = vmatpush1.msra.mxu0 0.0
      %210 = vmatprep.subr.mxu0 0.0
      %211 = vmatpush1.msra.mxu0 0.0
      %212 = vmatprep.subr.mxu0 0.0
      %213 = vmatpush1.msra.mxu0 0.0
      %214 = vmatprep.subr.mxu0 0.0
      %215 = vmatpush1.msra.mxu0 0.0
      %216 = vmatprep.subr.mxu0 0.0
      %217 = vmatpush1.msra.mxu0 0.0
      %218 = vmatprep.subr.mxu0 0.0
      %219 = vmatpush1.msra.mxu0 0.0
      %220 = vmatprep.subr.mxu0 0.0
      %221 = vmatpush1.msra.mxu0 0.0
      %222 = vmatprep.subr.mxu0 0.0
      %223 = vmatpush1.msra.mxu0 0.0
      %224 = vmatprep.subr.mxu0 0.0
      %225 = vmatpush1.msra.mxu0 0.0
      %226 = vmatprep.subr.mxu0 0.0
      %227 = vmatpush1.msra.mxu0 0.0
      %228 = vmatprep.subr.mxu0 0.0
      %229 = vmatpush1.msra.mxu0 0.0
      %230 = vmatprep.subr.mxu0 0.0
      %231 = vmatpush1.msra.mxu0 0.0
      %232 = vmatprep.subr.mxu0 0.0
      %233 = vmatpush1.msra.mxu0 0.0
      %234 = vmatprep.subr.mxu0 0.0
      %235 = vmatpush1.msra.mxu0 0.0
      %236 = vmatprep.subr.mxu0 0.0
      %237 = vmatpush1.msra.mxu0 0.0
      %238 = vmatprep.subr.mxu0 0.0
      %239 = vmatpush1.msra.mxu0 0.0
      %240 = vmatprep.subr.mxu0 0.0
      %241 = vmatpush1.msra.mxu0 0.0
      %242 = vmatprep.subr.mxu0 0.0
      %243 = vmatpush1.msra.mxu0 0.0
      %244 = vmatprep.subr.mxu0 0.0
      %245 = vmatpush1.msra.mxu0 0.0
      %246 = vmatprep.subr.mxu0 0.0
      %247 = vmatpush1.msra.mxu0 0.0
      %248 = vmatprep.subr.mxu0 0.0
      %249 = vmatpush1.msra.mxu0 0.0
      %250 = vmatprep.subr.mxu0 0.0
      %251 = vmatpush1.msra.mxu0 0.0
      %252 = vmatprep.subr.mxu0 0.0
      %253 = vmatpush1.msra.mxu0 0.0
      %254 = vmatprep.subr.mxu0 0.0
      %255 = vmatpush1.msra.mxu0 0.0
      %256 = vmatprep.subr.mxu0 0.0
      %257 = vmatpush1.msra.mxu0 0.0
      %258 = vmatprep.subr.mxu0 0.0
      %259 = vmatpush1.msra.mxu0 0.0
      %260 = vmatprep.subr.mxu0 0.0
      %261 = vmatpush1.msra.mxu0 0.0
      %262 = vmatprep.subr.mxu0 0.0
      %263 = vmatpush1.msra.mxu0 0.0
      %264 = vmatprep.mubr.f32.mxu0 0.0
      %265 = vmatmul.mubr.f32.gmra.mrb[0].mxu0 %v198
      %v266 = vpop.f32.mrb[0].mxu0
      %v267 = vadd.f32 %v195, %v266
      %v268 = vpop.f32.mrb[0].mxu0
      %269 = vdwg.mxu0
      %v270 = vxor.u32 %v267, 2147483648
      %v271 = vmul.f32 %v270, 1.442695
      %v272 = vpow.pop %v271
      %v273 = vadd.f32 %v272, 1.0
      %v274 = vrcp.pop %v273
      %v275 = vmul.f32 1.0, %v274
      %277 = vset.pattern.permute.xlu0 0
      %278 = vperm.xlu0 %277, %v275
      %v279 = vpop.permute.xlu0 %278
      %v281 = vmul.f32 %v188, %v279
      %v282 = vmul.f32 %v189, %v279
      %v283 = vmax.f32 %v281, 0.0
      %v284 = vmax.f32 %v282, 0.0
      %285 = vst [vmem:[%s187] sm:$0xff] %v283
      %286 = vst [vmem:[%s187 + $0x8] sm:$0xff] %v284
      %p287 = scmp.lt.s32.totalorder %s14, 1
      %s288 = scalar_select %p287, %s14, 1
      %s289 = smul.addr %s288, 2
      %s290 = smul.addr %s289, 8
      %s291 = scalar_lea.vmem %s3, %s290
      // Predicated region
      $region33: #{cca.1} parent=31 // pred_check
        %p292 = pneg %p105
      $region34: #{cca.1} parent=31 // pred_check_branch
        %294 = sbr.rel (%p292) target = $region36
      $region35: #{cca.1} parent=31 // pred_region
        _
      $region36: #{cca.1} parent=31 // pred_fallthru
        _
    $region32: #{cca.1} parent=5 // pred_fallthru
      _
    %p295 = scmp.le.s32.totalorder 2, %s9
    // Predicated region
    $region37: #{cca.1} parent=5 // pred_check
      %p296 = pneg %p295
    $region38: #{cca.1} parent=5 // pred_check_branch
      %298 = sbr.rel (%p296) target = $region40
    $region39: #{cca.1} parent=5 // pred_region
      %s299 = ssub.s32 %s9, 2
      // Predicated region
      $region41: #{cca.1} parent=39 // pred_check
        %p300 = pneg %p111
      $region42: #{cca.1} parent=39 // pred_check_branch
        %302 = sbr.rel (%p300) target = $region44
      $region43: #{cca.1} parent=39 // pred_region
        %p303 = scmp.lt.s32.totalorder %s15, 1
        %s304 = scalar_select %p303, %s15, 1
        %s305 = smul.addr %s304, 2
        %s306 = smul.addr %s305, 8
        %s307 = scalar_lea.vmem %s3, %s306
      $region44: #{cca.1} parent=39 // pred_fallthru
        _
    $region40: #{cca.1} parent=5 // pred_fallthru
      _
  $region6: #{cca.1} parent=0 // loop_footer
    %s13 = sadd.s32 1, %s9
  $region7: #{cca.1} parent=0 // loop_footer_branch
    %8 = sbr.rel target = $region3
  $region8: #{cca.1} parent=0 // loop_exit
    _

</llo_original>
